<compile_context>
chip_gen: v5e
topology: v5e:2x2
jax: 0.10.0
libtpu: 0.0.40
codegen_flags: <defaults>
</compile_context>

<pallas_src>
import math

import jax
import jax.numpy as jnp
from jax.experimental import pallas as pl
from jax.experimental.pallas import tpu as pltpu

HIDDEN1_UNITS = 300
HIDDEN2_UNITS = 600

# Lane-aligned (multiple-of-128) padded hidden sizes.  Zero padding keeps the
# math identical: padded h1/h2 columns are relu(0 + 0) = 0 and only meet zero
# weight rows / zero w3 entries downstream.
H1_PAD = 384  # 3 * 128
H2_PAD = 640  # 5 * 128


def qnet_kernel(x_ref, a_ref, w1_ref, b1_ref, w2_ref, b2_ref, w3_ref, b3_ref,
                out_ref, cat_ref):
    sd = x_ref.shape[1]
    ad = a_ref.shape[1]

    # Fused concat: copy the x and a tiles into one VMEM slab so fc1 is a
    # single matmul (one MXU weight-load) instead of two tiny-K dots.
    cat_ref[:, :sd] = x_ref[...]
    cat_ref[:, sd:sd + ad] = a_ref[...]

    # fc1: bf16 MXU matmul, f32 accumulation; bias+ReLU in f32.
    h1 = jnp.dot(cat_ref[...].astype(jnp.bfloat16), w1_ref[...],
                 preferred_element_type=jnp.float32)
    h1 = jnp.maximum(h1 + b1_ref[...], 0.0)

    # fc2: the dominant matmul — cast activations to bf16 right before the dot,
    # accumulate in f32.
    h2 = jnp.dot(h1.astype(jnp.bfloat16), w2_ref[...],
                 preferred_element_type=jnp.float32)
    h2 = jnp.maximum(h2 + b2_ref[...], 0.0)

    # fc3 (out_features = 1): f32 VPU multiply + lane reduction instead of an
    # N=1 matmul that would use <1% of the MXU output lanes.
    q = jnp.sum(h2 * w3_ref[...], axis=-1, keepdims=True) + b3_ref[...]
    out_ref[...] = q.astype(out_ref.dtype)


def _round_up_to_8(n):
    return ((n + 7) // 8) * 8


def qnet_forward(x, a, kernel_params, *, block_b=1024):
    """x: (B, state_dim), a: (B, action_dim) -> (B, 1)."""
    w1, b1, w2, b2, w3, b3 = kernel_params
    B, sd = x.shape
    _, ad = a.shape

    # Batch tile: whole batch for tiny B; otherwise guarantee >= 2 tiles so the
    # "parallel" batch axis can be split across v7x's two TensorCores, capped
    # at block_b and kept a multiple of 8 (sublane alignment).
    if B <= 8:
        tb = B
    else:
        tb = min(block_b, _round_up_to_8(pl.cdiv(B, 2)))
    grid = (pl.cdiv(B, tb),)

    def batch_spec(last_dim):
        return pl.BlockSpec((tb, last_dim), lambda i: (i, 0))

    def const_spec(arr):
        # Weights/biases: same block every grid step -> fetched once and kept
        # VMEM-resident by the pipeliner (no per-step re-DMA).
        return pl.BlockSpec(arr.shape, lambda i: (0, 0))

    # Padded FLOPs (what the MXU actually executes) and bf16 weight bytes.
    flops = 2 * B * ((sd + ad) * H1_PAD + H1_PAD * H2_PAD + H2_PAD)
    bytes_accessed = (4 * B * (sd + ad + 1)                       # f32 activations
                      + 2 * ((sd + ad) * H1_PAD + H1_PAD * H2_PAD)  # bf16 weights
                      + 4 * (H1_PAD + 2 * H2_PAD + 1))            # f32 biases + w3

    out = pl.pallas_call(
        qnet_kernel,
        out_shape=jax.ShapeDtypeStruct((B, 1), jnp.float32),
        grid=grid,
        in_specs=[
            batch_spec(sd),      # x
            batch_spec(ad),      # a
            const_spec(w1),
            const_spec(b1),
            const_spec(w2),
            const_spec(b2),
            const_spec(w3),
            const_spec(b3),
        ],
        out_specs=pl.BlockSpec((tb, 1), lambda i: (i, 0)),
        scratch_shapes=[
            # Persistent concat slab for the fused fc1 input (f32; cast to bf16
            # only at the dot, keeping elementwise work in f32 for v5e).
            pltpu.VMEM((tb, sd + ad), jnp.float32),
        ],
        compiler_params=pltpu.CompilerParams(
            # Batch tiles are independent -> shard across TCs on v7x.
            dimension_semantics=("parallel",),
            # ~0.5 MiB bf16 weights + tiled activations/intermediates; well
            # within every generation's VMEM (v7x physical = 64 MiB).
            vmem_limit_bytes=32 << 20,
        ),
        cost_estimate=pl.CostEstimate(
            flops=int(flops),
            transcendentals=0,
            bytes_accessed=int(bytes_accessed),
        ),
    )(x, a, w1, b1, w2, b2, w3, b3)
    return out


def init_qnet_params(key, state_dim, action_dim):
    """Mimics torch.nn.Linear default init (U[-1/sqrt(fan_in), +1/sqrt(fan_in)]).

    Returns the *logical* (unpadded, f32) parameters:
      w1: (d_in, 300), b1: (1, 300), w2: (300, 600), b2: (1, 600),
      w3: (1, 600)  [fc3 weight, lane-dense], b3: (1, 1).
    """
    d_in = state_dim + action_dim
    keys = jax.random.split(key, 6)

    def _uniform(k, shape, fan_in):
        bound = 1.0 / math.sqrt(fan_in)
        return jax.random.uniform(k, shape, minval=-bound, maxval=bound,
                                  dtype=jnp.float32)

    w1 = _uniform(keys[0], (d_in, HIDDEN1_UNITS), d_in)
    b1 = _uniform(keys[1], (1, HIDDEN1_UNITS), d_in)
    w2 = _uniform(keys[2], (HIDDEN1_UNITS, HIDDEN2_UNITS), HIDDEN1_UNITS)
    b2 = _uniform(keys[3], (1, HIDDEN2_UNITS), HIDDEN1_UNITS)
    w3 = _uniform(keys[4], (1, HIDDEN2_UNITS), HIDDEN2_UNITS)
    b3 = _uniform(keys[5], (1, 1), HIDDEN2_UNITS)
    return w1, b1, w2, b2, w3, b3


def pack_params_for_kernel(params):
    """Zero-pad hidden dims to lane multiples; matmul weights stored as bf16."""
    w1, b1, w2, b2, w3, b3 = params
    d_in = w1.shape[0]
    w1p = jnp.zeros((d_in, H1_PAD), jnp.float32).at[:, :HIDDEN1_UNITS].set(w1)
    b1p = jnp.zeros((1, H1_PAD), jnp.float32).at[:, :HIDDEN1_UNITS].set(b1)
    w2p = (jnp.zeros((H1_PAD, H2_PAD), jnp.float32)
           .at[:HIDDEN1_UNITS, :HIDDEN2_UNITS].set(w2))
    b2p = jnp.zeros((1, H2_PAD), jnp.float32).at[:, :HIDDEN2_UNITS].set(b2)
    w3p = jnp.zeros((1, H2_PAD), jnp.float32).at[:, :HIDDEN2_UNITS].set(w3)
    return (w1p.astype(jnp.bfloat16), b1p,
            w2p.astype(jnp.bfloat16), b2p,
            w3p, b3)  # w3/b3 stay f32: fc3 is VPU elementwise + reduce


def _reference(x, a, params):
    """Pure-JAX f32 reference (unpadded math, same as the torch module)."""
    w1, b1, w2, b2, w3, b3 = params
    cat = jnp.concatenate([x, a], axis=1)
    h1 = jnp.maximum(cat @ w1 + b1, 0.0)
    h2 = jnp.maximum(h1 @ w2 + b2, 0.0)
    return h2 @ w3.T + b3


if __name__ == "__main__":
    key = jax.random.PRNGKey(0)
    k_params, k_x, k_a, k_x2, k_a2 = jax.random.split(key, 5)

    state_dim = 16
    action_dim = 4

    params = init_qnet_params(k_params, state_dim, action_dim)
    kernel_params = pack_params_for_kernel(params)

    # Case 1: tiny batch (single tile).
    batch = 2
    x = jax.random.normal(k_x, (batch, state_dim), dtype=jnp.float32)
    a = jax.random.normal(k_a, (batch, action_dim), dtype=jnp.float32)
    q = qnet_forward(x, a, kernel_params)
    jax.block_until_ready(q)
    q_ref = _reference(x, a, params)
    assert q.shape == (batch, 1)
    # bf16 matmul inputs with f32 accumulation -> loosened tolerance vs f32 ref.
    assert jnp.allclose(q, q_ref, atol=5e-2, rtol=5e-2), (q, q_ref)

    # Case 2: multi-tile batch path (grid >= 2, exercises partial last tile).
    batch2 = 67
    x2 = jax.random.normal(k_x2, (batch2, state_dim), dtype=jnp.float32)
    a2 = jax.random.normal(k_a2, (batch2, action_dim), dtype=jnp.float32)
    q2 = qnet_forward(x2, a2, kernel_params)
    jax.block_until_ready(q2)
    q2_ref = _reference(x2, a2, params)
    assert q2.shape == (batch2, 1)
    assert jnp.allclose(q2, q2_ref, atol=5e-2, rtol=5e-2), (q2, q2_ref)

    print("KERNEL_OK")
</pallas_src>

<mosaic_0001>
module attributes {stable_mosaic.version = 11 : i64} {
  func.func @qnet_kernel(%arg0: i32, %arg1: memref<2x16xf32, #tpu.memory_space<vmem>>, %arg2: memref<2x4xf32, #tpu.memory_space<vmem>>, %arg3: memref<20x384xbf16, #tpu.memory_space<vmem>>, %arg4: memref<1x384xf32, #tpu.memory_space<vmem>>, %arg5: memref<384x640xbf16, #tpu.memory_space<vmem>>, %arg6: memref<1x640xf32, #tpu.memory_space<vmem>>, %arg7: memref<1x640xf32, #tpu.memory_space<vmem>>, %arg8: memref<1x1xf32, #tpu.memory_space<vmem>>, %arg9: memref<2x1xf32, #tpu.memory_space<vmem>>, %arg10: memref<2x20xf32, #tpu.memory_space<vmem>>) attributes {dimension_semantics = [#tpu.dimension_semantics<parallel>], iteration_bounds = array<i64: 1>, scalar_prefetch = 0 : i64, scratch_operands = 1 : i64, tpu.core_type = #tpu.core_type<tc>, window_params = [{transform_indices = @transform_0, window_bounds = array<i64: 2, 16>}, {transform_indices = @transform_1, window_bounds = array<i64: 2, 4>}, {pipeline_mode = #tpu.pipeline_mode<synchronous>, transform_indices = @transform_2, window_bounds = array<i64: 20, 384>}, {pipeline_mode = #tpu.pipeline_mode<synchronous>, transform_indices = @transform_3, window_bounds = array<i64: 1, 384>}, {pipeline_mode = #tpu.pipeline_mode<synchronous>, transform_indices = @transform_4, window_bounds = array<i64: 384, 640>}, {pipeline_mode = #tpu.pipeline_mode<synchronous>, transform_indices = @transform_5, window_bounds = array<i64: 1, 640>}, {pipeline_mode = #tpu.pipeline_mode<synchronous>, transform_indices = @transform_6, window_bounds = array<i64: 1, 640>}, {pipeline_mode = #tpu.pipeline_mode<synchronous>, transform_indices = @transform_7, window_bounds = array<i64: 1, 1>}, {transform_indices = @transform_8, window_bounds = array<i64: 2, 1>}]} {
    %c0 = arith.constant 0 : index
    %c0_0 = arith.constant 0 : index
    %0 = vector.load %arg1[%c0, %c0_0] : memref<2x16xf32, #tpu.memory_space<vmem>>, vector<2x16xf32>
    %c0_1 = arith.constant 0 : index
    %c0_2 = arith.constant 0 : index
    %1 = vector.load %arg10[%c0_1, %c0_2] : memref<2x20xf32, #tpu.memory_space<vmem>>, vector<2x16xf32>
    tpu.vector_store %arg10[%c0_1, %c0_2], %0 {strides = array<i32>} : memref<2x20xf32, #tpu.memory_space<vmem>>, vector<2x16xf32>,
    %c0_3 = arith.constant 0 : index
    %c0_4 = arith.constant 0 : index
    %2 = vector.load %arg2[%c0_3, %c0_4] : memref<2x4xf32, #tpu.memory_space<vmem>>, vector<2x4xf32>
    %c0_5 = arith.constant 0 : index
    %c16 = arith.constant 16 : index
    %3 = vector.load %arg10[%c0_5, %c16] : memref<2x20xf32, #tpu.memory_space<vmem>>, vector<2x4xf32>
    tpu.vector_store %arg10[%c0_5, %c16], %2 {strides = array<i32>} : memref<2x20xf32, #tpu.memory_space<vmem>>, vector<2x4xf32>,
    %c0_6 = arith.constant 0 : index
    %c0_7 = arith.constant 0 : index
    %4 = vector.load %arg10[%c0_6, %c0_7] : memref<2x20xf32, #tpu.memory_space<vmem>>, vector<2x20xf32>
    %5 = arith.truncf %4 : vector<2x20xf32> to vector<2x20xbf16>
    %c0_8 = arith.constant 0 : index
    %c0_9 = arith.constant 0 : index
    %6 = vector.load %arg3[%c0_8, %c0_9] : memref<20x384xbf16, #tpu.memory_space<vmem>>, vector<20x384xbf16>
    %cst = arith.constant dense<0.000000e+00> : vector<2x384xf32>
    %7 = tpu.matmul %5, %6, %cst {dimension_numbers = #tpu.dot_dimension_numbers<[1], [0], [0], [1], [0, 0, 1, 1], [], []>} : vector<2x20xbf16>, vector<20x384xbf16>, vector<2x384xf32> -> vector<2x384xf32>
    %c0_10 = arith.constant 0 : index
    %c0_11 = arith.constant 0 : index
    %8 = vector.load %arg4[%c0_10, %c0_11] : memref<1x384xf32, #tpu.memory_space<vmem>>, vector<1x384xf32>
    %9 = vector.broadcast %8 : vector<1x384xf32> to vector<2x384xf32>
    %10 = arith.addf %7, %9 : vector<2x384xf32>
    %cst_12 = arith.constant 0.000000e+00 : f32
    %11 = vector.broadcast %cst_12 : f32 to vector<2x384xf32>
    %12 = arith.maximumf %10, %11 : vector<2x384xf32>
    %13 = arith.truncf %12 : vector<2x384xf32> to vector<2x384xbf16>
    %c0_13 = arith.constant 0 : index
    %c0_14 = arith.constant 0 : index
    %14 = vector.load %arg5[%c0_13, %c0_14] : memref<384x640xbf16, #tpu.memory_space<vmem>>, vector<384x640xbf16>
    %cst_15 = arith.constant dense<0.000000e+00> : vector<2x640xf32>
    %15 = tpu.matmul %13, %14, %cst_15 {dimension_numbers = #tpu.dot_dimension_numbers<[1], [0], [0], [1], [0, 0, 1, 1], [], []>} : vector<2x384xbf16>, vector<384x640xbf16>, vector<2x640xf32> -> vector<2x640xf32>
    %c0_16 = arith.constant 0 : index
    %c0_17 = arith.constant 0 : index
    %16 = vector.load %arg6[%c0_16, %c0_17] : memref<1x640xf32, #tpu.memory_space<vmem>>, vector<1x640xf32>
    %17 = vector.broadcast %16 : vector<1x640xf32> to vector<2x640xf32>
    %18 = arith.addf %15, %17 : vector<2x640xf32>
    %cst_18 = arith.constant 0.000000e+00 : f32
    %19 = vector.broadcast %cst_18 : f32 to vector<2x640xf32>
    %20 = arith.maximumf %18, %19 : vector<2x640xf32>
    %c0_19 = arith.constant 0 : index
    %c0_20 = arith.constant 0 : index
    %21 = vector.load %arg7[%c0_19, %c0_20] : memref<1x640xf32, #tpu.memory_space<vmem>>, vector<1x640xf32>
    %22 = vector.broadcast %21 : vector<1x640xf32> to vector<2x640xf32>
    %23 = arith.mulf %20, %22 : vector<2x640xf32>
    %cst_21 = arith.constant dense<0.000000e+00> : vector<2xf32>
    %24 = vector.multi_reduction <add>, %23, %cst_21 [1] : vector<2x640xf32> to vector<2xf32>
    %25 = vector.shape_cast %24 : vector<2xf32> to vector<2x1xf32>
    %c0_22 = arith.constant 0 : index
    %c0_23 = arith.constant 0 : index
    %26 = vector.load %arg8[%c0_22, %c0_23] : memref<1x1xf32, #tpu.memory_space<vmem>>, vector<1x1xf32>
    %27 = vector.broadcast %26 : vector<1x1xf32> to vector<2x1xf32>
    %28 = arith.addf %25, %27 : vector<2x1xf32>
    %c0_24 = arith.constant 0 : index
    %c0_25 = arith.constant 0 : index
    %29 = vector.load %arg9[%c0_24, %c0_25] : memref<2x1xf32, #tpu.memory_space<vmem>>, vector<2x1xf32>
    tpu.vector_store %arg9[%c0_24, %c0_25], %28 {strides = array<i32>} : memref<2x1xf32, #tpu.memory_space<vmem>>, vector<2x1xf32>,
    return
  }
  func.func @transform_0(%arg0: i32) -> (i32, i32) {
    %c0_i32 = arith.constant 0 : i32
    %c0_i32_0 = arith.constant 0 : i32
    return %arg0, %c0_i32 : i32, i32
  }
  func.func @transform_1(%arg0: i32) -> (i32, i32) {
    %c0_i32 = arith.constant 0 : i32
    %c0_i32_0 = arith.constant 0 : i32
    return %arg0, %c0_i32 : i32, i32
  }
  func.func @transform_2(%arg0: i32) -> (i32, i32) {
    %c0_i32 = arith.constant 0 : i32
    %c0_i32_0 = arith.constant 0 : i32
    %c0_i32_1 = arith.constant 0 : i32
    return %c0_i32, %c0_i32_0 : i32, i32
  }
  func.func @transform_3(%arg0: i32) -> (i32, i32) {
    %c0_i32 = arith.constant 0 : i32
    %c0_i32_0 = arith.constant 0 : i32
    %c0_i32_1 = arith.constant 0 : i32
    return %c0_i32, %c0_i32_0 : i32, i32
  }
  func.func @transform_4(%arg0: i32) -> (i32, i32) {
    %c0_i32 = arith.constant 0 : i32
    %c0_i32_0 = arith.constant 0 : i32
    %c0_i32_1 = arith.constant 0 : i32
    return %c0_i32, %c0_i32_0 : i32, i32
  }
  func.func @transform_5(%arg0: i32) -> (i32, i32) {
    %c0_i32 = arith.constant 0 : i32
    %c0_i32_0 = arith.constant 0 : i32
    %c0_i32_1 = arith.constant 0 : i32
    return %c0_i32, %c0_i32_0 : i32, i32
  }
  func.func @transform_6(%arg0: i32) -> (i32, i32) {
    %c0_i32 = arith.constant 0 : i32
    %c0_i32_0 = arith.constant 0 : i32
    %c0_i32_1 = arith.constant 0 : i32
    return %c0_i32, %c0_i32_0 : i32, i32
  }
  func.func @transform_7(%arg0: i32) -> (i32, i32) {
    %c0_i32 = arith.constant 0 : i32
    %c0_i32_0 = arith.constant 0 : i32
    %c0_i32_1 = arith.constant 0 : i32
    return %c0_i32, %c0_i32_0 : i32, i32
  }
  func.func @transform_8(%arg0: i32) -> (i32, i32) {
    %c0_i32 = arith.constant 0 : i32
    %c0_i32_0 = arith.constant 0 : i32
    return %arg0, %c0_i32 : i32, i32
  }
}

</mosaic_0001>

<llo_original>
// kernel: tpu_custom_call.1
$region0: #{tpu_custom_call.1}
  #allocation0 [shape = 'u32[]', space=smem, size = 0x4, offset = 0x4, fixed_abs, tag = 'smem constant byte address 0x4 - core index']
  #allocation1 [shape = 'u32[72,128]{1,0:T(1,128)}', space=vmem, size = 0x9000, scoped, tag = 'internal scratch']
  #allocation2 [shape = 'f32[2,20]{1,0:T(2,128)}', space=vmem, size = 0x400, scoped, tag = 'scratch operand']
  #allocation3 [shape = 'f32[1,1]{1,0:T(1,128)S(1)}', space=vmem, size = 0x200, scoped, tag = 'scoped memory for tpu_custom_call.1']
  %s0 = inlined_call_operand.hbm [shape: f32[2,16], index: 0, kind: input, shape index: {}]
  %s1 = inlined_call_operand.hbm [shape: f32[2,4], index: 1, kind: input, shape index: {}]
  %s2 = inlined_call_operand.hbm [shape: bf16[20,384], index: 2, kind: input, shape index: {}]
  %s3 = inlined_call_operand.hbm [shape: f32[1,384], index: 3, kind: input, shape index: {}]
  %s4 = inlined_call_operand.hbm [shape: bf16[384,640], index: 4, kind: input, shape index: {}]
  %s5 = inlined_call_operand.vmem [shape: f32[1,640], index: 5, kind: input, shape index: {}]
  %s6 = inlined_call_operand.hbm [shape: f32[1,640], index: 6, kind: input, shape index: {}]
  %s7 = inlined_call_operand.<no memory space> [shape: f32[1,1], index: 7, kind: input, shape index: {}]
  %s8 = inlined_call_operand.vmem [shape: f32[2,1], index: 8, kind: output, shape index: {}]
  %s9 = sld [smem:[#allocation0]]
  $region66: #{tpu_custom_call.1} parent=0
    _
  %s11 = ssub.s32 1, %s9
  %s12 = scalar_select 0, %s11, %s9
  %v13 = vstv %s7
  %14 = vst [vmem:[#allocation3] sm:$0x1] %v13
  $region1: #{tpu_custom_call.1} parent=0
    #allocation4 [shape = 'u8[1024]{0}', space=vmem, size = 0x400, scoped, tag = 'input window, operand 0, single buffered']
    #allocation5 [shape = 's32[1]{0}', space=sflag, size = 0x4, scoped, tag = 'scoped memory for tpu_custom_call.1']
    #allocation6 [shape = 'u8[1024]{0}', space=vmem, size = 0x400, scoped, tag = 'input window, operand 1, single buffered']
    #allocation7 [shape = 's32[1]{0}', space=sflag, size = 0x4, scoped, tag = 'scoped memory for tpu_custom_call.1']
    #allocation8 [shape = 'u8[18432]{0}', space=vmem, size = 0x4800, scoped, tag = 'input window, operand 2, single buffered']
    #allocation9 [shape = 'u8[1536]{0}', space=vmem, size = 0x800, scoped, tag = 'input window, operand 3, single buffered']
    #allocation10 [shape = 's32[1]{0}', space=sflag, size = 0x4, scoped, tag = 'scoped memory for tpu_custom_call.1']
    #allocation11 [shape = 'u8[491520]{0}', space=vmem, size = 0x78000, scoped, tag = 'input window, operand 4, single buffered']
    #allocation12 [shape = 'u8[2560]{0}', space=vmem, size = 0xc00, scoped, tag = 'input window, operand 6, single buffered']
    #allocation13 [shape = 's32[1]{0}', space=sflag, size = 0x4, scoped, tag = 'scoped memory for tpu_custom_call.1']
    %15 = vsyncpa [#allocation5], 0
    %16 = vsyncpa [#allocation7], 0
    %17 = vsyncpa [#allocation10], 0
    %18 = vsyncpa [#allocation13], 0
    // Predicated region
    $region2: #{tpu_custom_call.1} parent=1 // pred_check
      _
    $region3: #{tpu_custom_call.1} parent=1 // pred_check_branch
      %20 = sbr.rel (0) target = $region5
    $region4: #{tpu_custom_call.1} parent=1 // pred_region
      %22 = vsyncadd [#allocation5], 0
      %s24 = sshll.u32 %s0, 4
      %s25 = int_to_ptr.hbm [resolvable:$true] %s24
      %s26 = sshll.u32 [#allocation4], 4
      %s27 = int_to_ptr.vmem [resolvable:$true] %s26
      %29 = dma.hbm_to_vmem [thread:$0]  %s25, 32, %s27, [#allocation5]
    $region5: #{tpu_custom_call.1} parent=1 // pred_fallthru
      _
    // Predicated region
    $region6: #{tpu_custom_call.1} parent=1 // pred_check
      _
    $region7: #{tpu_custom_call.1} parent=1 // pred_check_branch
      %31 = sbr.rel (0) target = $region9
    $region8: #{tpu_custom_call.1} parent=1 // pred_region
      %33 = vsyncadd [#allocation7], 0
      %s35 = sshll.u32 %s1, 4
      %s36 = int_to_ptr.hbm [resolvable:$true] %s35
      %s37 = sshll.u32 [#allocation6], 4
      %s38 = int_to_ptr.vmem [resolvable:$true] %s37
      %40 = dma.hbm_to_vmem [thread:$0]  %s36, 32, %s38, [#allocation7]
    $region9: #{tpu_custom_call.1} parent=1 // pred_fallthru
      _
    // Predicated region
    $region10: #{tpu_custom_call.1} parent=1 // pred_check
      _
    $region11: #{tpu_custom_call.1} parent=1 // pred_check_branch
      %42 = sbr.rel (0) target = $region13
    $region12: #{tpu_custom_call.1} parent=1 // pred_region
      %44 = vsyncadd [#allocation7], 0
      %s45 = sshll.u32 %s2, 4
      %s46 = int_to_ptr.hbm [resolvable:$true] %s45
      %s47 = sshll.u32 [#allocation8], 4
      %s48 = int_to_ptr.vmem [resolvable:$true] %s47
      %53 = dma.hbm_to_vmem [thread:$0]  %s46, 576, %s48, [#allocation7], 192, 192, 12
    $region13: #{tpu_custom_call.1} parent=1 // pred_fallthru
      _
    // Predicated region
    $region14: #{tpu_custom_call.1} parent=1 // pred_check
      _
    $region15: #{tpu_custom_call.1} parent=1 // pred_check_branch
      %55 = sbr.rel (0) target = $region17
    $region16: #{tpu_custom_call.1} parent=1 // pred_region
      %57 = vsyncadd [#allocation10], 0
      %s59 = sshll.u32 %s3, 4
      %s60 = int_to_ptr.hbm [resolvable:$true] %s59
      %s61 = sshll.u32 [#allocation9], 4
      %s62 = int_to_ptr.vmem [resolvable:$true] %s61
      %64 = dma.hbm_to_vmem [thread:$0]  %s60, 48, %s62, [#allocation10]
    $region17: #{tpu_custom_call.1} parent=1 // pred_fallthru
      _
    // Predicated region
    $region18: #{tpu_custom_call.1} parent=1 // pred_check
      _
    $region19: #{tpu_custom_call.1} parent=1 // pred_check_branch
      %66 = sbr.rel (0) target = $region21
    $region20: #{tpu_custom_call.1} parent=1 // pred_region
      %68 = vsyncadd [#allocation10], 0
      %s69 = sshll.u32 %s4, 4
      %s70 = int_to_ptr.hbm [resolvable:$true] %s69
      %s71 = sshll.u32 [#allocation11], 4
      %s72 = int_to_ptr.vmem [resolvable:$true] %s71
      %77 = dma.hbm_to_vmem [thread:$0]  %s70, 15360, %s72, [#allocation10], 320, 320, 20
    $region21: #{tpu_custom_call.1} parent=1 // pred_fallthru
      _
    // Predicated region
    $region22: #{tpu_custom_call.1} parent=1 // pred_check
      _
    $region23: #{tpu_custom_call.1} parent=1 // pred_check_branch
      %79 = sbr.rel (0) target = $region25
    $region24: #{tpu_custom_call.1} parent=1 // pred_region
      _
    $region25: #{tpu_custom_call.1} parent=1 // pred_fallthru
      _
    // Predicated region
    $region26: #{tpu_custom_call.1} parent=1 // pred_check
      _
    $region27: #{tpu_custom_call.1} parent=1 // pred_check_branch
      %81 = sbr.rel (0) target = $region29
    $region28: #{tpu_custom_call.1} parent=1 // pred_region
      %83 = vsyncadd [#allocation13], 0
      %s85 = sshll.u32 %s6, 4
      %s86 = int_to_ptr.hbm [resolvable:$true] %s85
      %s87 = sshll.u32 [#allocation12], 4
      %s88 = int_to_ptr.vmem [resolvable:$true] %s87
      %90 = dma.hbm_to_vmem [thread:$0]  %s86, 80, %s88, [#allocation13]
    $region29: #{tpu_custom_call.1} parent=1 // pred_fallthru
      _
    // Predicated region
    $region30: #{tpu_custom_call.1} parent=1 // pred_check
      _
    $region31: #{tpu_custom_call.1} parent=1 // pred_check_branch
      %92 = sbr.rel (0) target = $region33
    $region32: #{tpu_custom_call.1} parent=1 // pred_region
      _
    $region33: #{tpu_custom_call.1} parent=1 // pred_fallthru
      _
    // Predicated region
    $region34: #{tpu_custom_call.1} parent=1 // pred_check
      _
    $region35: #{tpu_custom_call.1} parent=1 // pred_check_branch
      %94 = sbr.rel (0) target = $region37
    $region36: #{tpu_custom_call.1} parent=1 // pred_region
      %96 = dma.done [#allocation5], 32
    $region37: #{tpu_custom_call.1} parent=1 // pred_fallthru
      _
    // Predicated region
    $region38: #{tpu_custom_call.1} parent=1 // pred_check
      _
    $region39: #{tpu_custom_call.1} parent=1 // pred_check_branch
      %98 = sbr.rel (0) target = $region41
    $region40: #{tpu_custom_call.1} parent=1 // pred_region
      %100 = dma.done [#allocation7], 32
    $region41: #{tpu_custom_call.1} parent=1 // pred_fallthru
      _
    // Predicated region
    $region42: #{tpu_custom_call.1} parent=1 // pred_check
      _
    $region43: #{tpu_custom_call.1} parent=1 // pred_check_branch
      %102 = sbr.rel (0) target = $region45
    $region44: #{tpu_custom_call.1} parent=1 // pred_region
      %104 = dma.done [#allocation7], 576
    $region45: #{tpu_custom_call.1} parent=1 // pred_fallthru
      _
    // Predicated region
    $region46: #{tpu_custom_call.1} parent=1 // pred_check
      _
    $region47: #{tpu_custom_call.1} parent=1 // pred_check_branch
      %106 = sbr.rel (0) target = $region49
    $region48: #{tpu_custom_call.1} parent=1 // pred_region
      %108 = dma.done [#allocation10], 48
    $region49: #{tpu_custom_call.1} parent=1 // pred_fallthru
      _
    // Predicated region
    $region50: #{tpu_custom_call.1} parent=1 // pred_check
      _
    $region51: #{tpu_custom_call.1} parent=1 // pred_check_branch
      %110 = sbr.rel (0) target = $region53
    $region52: #{tpu_custom_call.1} parent=1 // pred_region
      %112 = dma.done [#allocation10], 15360
    $region53: #{tpu_custom_call.1} parent=1 // pred_fallthru
      _
    // Predicated region
    $region54: #{tpu_custom_call.1} parent=1 // pred_check
      _
    $region55: #{tpu_custom_call.1} parent=1 // pred_check_branch
      %114 = sbr.rel (0) target = $region57
    $region56: #{tpu_custom_call.1} parent=1 // pred_region
      %116 = dma.done [#allocation13], 80
    $region57: #{tpu_custom_call.1} parent=1 // pred_fallthru
      _
    %v118 = vld [vmem:[#allocation4] sm:$0x3]
    %vm119 = vcmask 123904
    %120 = vst.msk [vmem:[#allocation2] sm:$0x3] %vm119, %v118
    %v121 = vld [vmem:[#allocation6] sm:$0x3]
    %123 = vrot.lane.b32.xlu0 %v121, 16
    %v124 = vpop.permute.xlu0 %123
    %vm126 = vcmask 156800
    %127 = vst.msk [vmem:[#allocation2] sm:$0x3] %vm126, %v124
    %v128 = vld [vmem:[#allocation2] sm:$0x3]
    %v129 = vpack.c.bf16 %v128, %v128
    %v130 = vld [vmem:[#allocation8] sm:$0xff]
    %v131 = vld [vmem:[#allocation8 + $0x8] sm:$0xf]
    %v132 = vld [vmem:[#allocation8 + $0xc] sm:$0xff]
    %v133 = vld [vmem:[#allocation8 + $0x14] sm:$0xf]
    %v134 = vld [vmem:[#allocation8 + $0x18] sm:$0x33]
    %v135 = vld [vmem:[#allocation8 + $0x20] sm:$0x3]
    %v136 = vld [vmem:[#allocation9] sm:$0x7]
    %v138 = vperm.slane %v136, 0
    %v139 = vperm.slane %v136, 1
    %v140 = vperm.slane %v136, 2
    %v150 = vunpack.c.l.b16 %v130
    %v151 = vunpack.c.h.b16 %v130
    %v152 = vunpack.c.l.b16 %v131
    %v153 = vunpack.c.l.b16 %v132
    %v154 = vunpack.c.h.b16 %v132
    %v155 = vunpack.c.l.b16 %v133
    %v156 = vunpack.c.l.b16 %v134
    %v157 = vunpack.c.h.b16 %v134
    %v158 = vunpack.c.l.b16 %v135
    %v159 = vpack.c.b16 %v153, %v150
    %v160 = vpack.c.b16 %v154, %v151
    %v161 = vpack.c.b16 %v155, %v152
    %v162 = vpack.c.b16 %v156, %v156
    %v163 = vpack.c.b16 %v157, %v157
    %v164 = vpack.c.b16 %v158, %v158
    %vm168 = vcmask 162816
    %v170 = vsel %vm168, %v129, 0
    %vm172 = vcmask 1041408
    %v174 = vsel %vm172, %v162, 0
    %v177 = vsel %vm172, %v163, 0
    %v180 = vsel %vm172, %v164, 0
    %182 = vmatpush.bf16.msra.mxu0 0
    %183 = vmatpush.bf16.msra.mxu0 0
    %184 = vmatpush.bf16.msra.mxu0 0
    %185 = vmatpush.bf16.msra.mxu0 0
    %186 = vmatpush.bf16.msra.mxu0 0
    %187 = vmatpush.bf16.msra.mxu0 0
    %188 = vmatpush.bf16.msra.mxu0 %v174
    %189 = vmatpush.bf16.msra.mxu0 %v159
    %190 = vmatmul.bf16.gmra.mxu0 %v170
    %v191 = vpop.f32.mrf.mxu0
    %v192 = vadd.f32 %v138, %v191
    %v193 = vpop.f32.mrf.mxu0
    %194 = vdwg.mxu0
    %195 = vmatpush.bf16.msra.mxu0 0
    %196 = vmatpush.bf16.msra.mxu0 0
    %197 = vmatpush.bf16.msra.mxu0 0
    %198 = vmatpush.bf16.msra.mxu0 0
    %199 = vmatpush.bf16.msra.mxu0 0
    %200 = vmatpush.bf16.msra.mxu0 0
    %201 = vmatpush.bf16.msra.mxu0 %v177
    %202 = vmatpush.bf16.msra.mxu0 %v160
    %203 = vmatmul.bf16.gmra.mxu0 %v170
    %v204 = vpop.f32.mrf.mxu0
    %v205 = vadd.f32 %v139, %v204
    %v206 = vpop.f32.mrf.mxu0
    %207 = vdwg.mxu0
    %208 = vmatpush.bf16.msra.mxu0 0
    %209 = vmatpush.bf16.msra.mxu0 0
    %210 = vmatpush.bf16.msra.mxu0 0
    %211 = vmatpush.bf16.msra.mxu0 0
    %212 = vmatpush.bf16.msra.mxu0 0
    %213 = vmatpush.bf16.msra.mxu0 0
    %214 = vmatpush.bf16.msra.mxu0 %v180
    %215 = vmatpush.bf16.msra.mxu0 %v161
    %216 = vmatmul.bf16.gmra.mxu0 %v170
    %v217 = vpop.f32.mrf.mxu0
    %v218 = vadd.f32 %v140, %v217
    %v219 = vpop.f32.mrf.mxu0
    %220 = vdwg.mxu0
    %v221 = vmax.f32 %v192, 0.0
    %v222 = vmax.f32 %v205, 0.0
    %v223 = vmax.f32 %v218, 0.0
    %v224 = vpack.c.bf16 %v221, %v221
    %v225 = vpack.c.bf16 %v222, %v222
    %v226 = vpack.c.bf16 %v223, %v223
    %v227 = vld [vmem:[#allocation11] sm:$0xff]
    %v228 = vld [vmem:[#allocation11 + $0x8] sm:$0xff]
    %v229 = vld [vmem:[#allocation11 + $0x10] sm:$0xf]
    %v230 = vld [vmem:[#allocation11 + $0x14] sm:$0xff]
    %v231 = vld [vmem:[#allocation11 + $0x1c] sm:$0xff]
    %v232 = vld [vmem:[#allocation11 + $0x24] sm:$0xf]
    %v233 = vld [vmem:[#allocation11 + $0x28] sm:$0xff]
    %v234 = vld [vmem:[#allocation11 + $0x30] sm:$0xff]
    %v235 = vld [vmem:[#allocation11 + $0x38] sm:$0xf]
    %v236 = vld [vmem:[#allocation11 + $0x3c] sm:$0xff]
    %v237 = vld [vmem:[#allocation11 + $0x44] sm:$0xff]
    %v238 = vld [vmem:[#allocation11 + $0x4c] sm:$0xf]
    %v239 = vld [vmem:[#allocation11 + $0x50] sm:$0xff]
    %v240 = vld [vmem:[#allocation11 + $0x58] sm:$0xff]
    %v241 = vld [vmem:[#allocation11 + $0x60] sm:$0xf]
    %v242 = vld [vmem:[#allocation11 + $0x64] sm:$0xff]
    %v243 = vld [vmem:[#allocation11 + $0x6c] sm:$0xff]
    %v244 = vld [vmem:[#allocation11 + $0x74] sm:$0xf]
    %v245 = vld [vmem:[#allocation11 + $0x78] sm:$0xff]
    %v246 = vld [vmem:[#allocation11 + $0x80] sm:$0xff]
    %v247 = vld [vmem:[#allocation11 + $0x88] sm:$0xf]
    %v248 = vld [vmem:[#allocation11 + $0x8c] sm:$0xff]
    %v249 = vld [vmem:[#allocation11 + $0x94] sm:$0xff]
    %v250 = vld [vmem:[#allocation11 + $0x9c] sm:$0xf]
    %v251 = vld [vmem:[#allocation11 + $0xa0] sm:$0xff]
    %v252 = vld [vmem:[#allocation11 + $0xa8] sm:$0xff]
    %v253 = vld [vmem:[#allocation11 + $0xb0] sm:$0xf]
    %v254 = vld [vmem:[#allocation11 + $0xb4] sm:$0xff]
    %v255 = vld [vmem:[#allocation11 + $0xbc] sm:$0xff]
    %v256 = vld [vmem:[#allocation11 + $0xc4] sm:$0xf]
    %v257 = vld [vmem:[#allocation11 + $0xc8] sm:$0xff]
    %v258 = vld [vmem:[#allocation11 + $0xd0] sm:$0xff]
    %v259 = vld [vmem:[#allocation11 + $0xd8] sm:$0xf]
    %v260 = vld [vmem:[#allocation11 + $0xdc] sm:$0xff]
    %v261 = vld [vmem:[#allocation11 + $0xe4] sm:$0xff]
    %v262 = vld [vmem:[#allocation11 + $0xec] sm:$0xf]
    %v263 = vld [vmem:[#allocation11 + $0xf0] sm:$0xff]
    %v264 = vld [vmem:[#allocation11 + $0xf8] sm:$0xff]
    %v265 = vld [vmem:[#allocation11 + $0x100] sm:$0xf]
    %v266 = vld [vmem:[#allocation11 + $0x104] sm:$0xff]
    %v267 = vld [vmem:[#allocation11 + $0x10c] sm:$0xff]
    %v268 = vld [vmem:[#allocation11 + $0x114] sm:$0xf]
    %v269 = vld [vmem:[#allocation11 + $0x118] sm:$0xff]
    %v270 = vld [vmem:[#allocation11 + $0x120] sm:$0xff]
    %v271 = vld [vmem:[#allocation11 + $0x128] sm:$0xf]
    %v272 = vld [vmem:[#allocation11 + $0x12c] sm:$0xff]
    %v273 = vld [vmem:[#allocation11 + $0x134] sm:$0xff]
    %v274 = vld [vmem:[#allocation11 + $0x13c] sm:$0xf]
    %v275 = vld [vmem:[#allocation11 + $0x140] sm:$0xff]
    %v276 = vld [vmem:[#allocation11 + $0x148] sm:$0xff]
    %v277 = vld [vmem:[#allocation11 + $0x150] sm:$0xf]
    %v278 = vld [vmem:[#allocation11 + $0x154] sm:$0xff]
    %v279 = vld [vmem:[#allocation11 + $0x15c] sm:$0xff]
    %v280 = vld [vmem:[#allocation11 + $0x164] sm:$0xf]
    %v281 = vld [vmem:[#allocation11 + $0x168] sm:$0xff]
    %v282 = vld [vmem:[#allocation11 + $0x170] sm:$0xff]
    %v283 = vld [vmem:[#allocation11 + $0x178] sm:$0xf]
    %v284 = vld [vmem:[#allocation11 + $0x17c] sm:$0xff]
    %v285 = vld [vmem:[#allocation11 + $0x184] sm:$0xff]
    %v286 = vld [vmem:[#allocation11 + $0x18c] sm:$0xf]
    %v287 = vld [vmem:[#allocation11 + $0x190] sm:$0xff]
    %v288 = vld [vmem:[#allocation11 + $0x198] sm:$0xff]
    %v289 = vld [vmem:[#allocation11 + $0x1a0] sm:$0xf]
    %v290 = vld [vmem:[#allocation11 + $0x1a4] sm:$0xff]
    %v291 = vld [vmem:[#allocation11 + $0x1ac] sm:$0xff]
    %v292 = vld [vmem:[#allocation11 + $0x1b4] sm:$0xf]
    %v293 = vld [vmem:[#allocation11 + $0x1b8] sm:$0xff]
    %v294 = vld [vmem:[#allocation11 + $0x1c0] sm:$0xff]
    %v295 = vld [vmem:[#allocation11 + $0x1c8] sm:$0xf]
    %v296 = vld [vmem:[#allocation11 + $0x1cc] sm:$0xff]
    %v297 = vld [vmem:[#allocation11 + $0x1d4] sm:$0xff]
    %v298 = vld [vmem:[#allocation11 + $0x1dc] sm:$0xf]
    %v299 = vld [vmem:[#allocation11 + $0x1e0] sm:$0xff]
    %v300 = vld [vmem:[#allocation11 + $0x1e8] sm:$0xff]
    %v301 = vld [vmem:[#allocation11 + $0x1f0] sm:$0xf]
    %v302 = vld [vmem:[#allocation11 + $0x1f4] sm:$0xff]
    %v303 = vld [vmem:[#allocation11 + $0x1fc] sm:$0xff]
    %v304 = vld [vmem:[#allocation11 + $0x204] sm:$0xf]
    %v305 = vld [vmem:[#allocation11 + $0x208] sm:$0xff]
    %v306 = vld [vmem:[#allocation11 + $0x210] sm:$0xff]
    %v307 = vld [vmem:[#allocation11 + $0x218] sm:$0xf]
    %v308 = vld [vmem:[#allocation11 + $0x21c] sm:$0xff]
    %v309 = vld [vmem:[#allocation11 + $0x224] sm:$0xff]
    %v310 = vld [vmem:[#allocation11 + $0x22c] sm:$0xf]
    %v311 = vld [vmem:[#allocation11 + $0x230] sm:$0xff]
    %v312 = vld [vmem:[#allocation11 + $0x238] sm:$0xff]
    %v313 = vld [vmem:[#allocation11 + $0x240] sm:$0xf]
    %v314 = vld [vmem:[#allocation11 + $0x244] sm:$0xff]
    %v315 = vld [vmem:[#allocation11 + $0x24c] sm:$0xff]
    %v316 = vld [vmem:[#allocation11 + $0x254] sm:$0xf]
    %v317 = vld [vmem:[#allocation11 + $0x258] sm:$0xff]
    %v318 = vld [vmem:[#allocation11 + $0x260] sm:$0xff]
    %v319 = vld [vmem:[#allocation11 + $0x268] sm:$0xf]
    %v320 = vld [vmem:[#allocation11 + $0x26c] sm:$0xff]
    %v321 = vld [vmem:[#allocation11 + $0x274] sm:$0xff]
    %v322 = vld [vmem:[#allocation11 + $0x27c] sm:$0xf]
    %v323 = vld [vmem:[#allocation11 + $0x280] sm:$0xff]
    %v324 = vld [vmem:[#allocation11 + $0x288] sm:$0xff]
    %v325 = vld [vmem:[#allocation11 + $0x290] sm:$0xf]
    %v326 = vld [vmem:[#allocation11 + $0x294] sm:$0xff]
    %v327 = vld [vmem:[#allocation11 + $0x29c] sm:$0xff]
    %v328 = vld [vmem:[#allocation11 + $0x2a4] sm:$0xf]
    %v329 = vld [vmem:[#allocation11 + $0x2a8] sm:$0xff]
    %v330 = vld [vmem:[#allocation11 + $0x2b0] sm:$0xff]
    %v331 = vld [vmem:[#allocation11 + $0x2b8] sm:$0xf]
    %v332 = vld [vmem:[#allocation11 + $0x2bc] sm:$0xff]
    %v333 = vld [vmem:[#allocation11 + $0x2c4] sm:$0xff]
    %v334 = vld [vmem:[#allocation11 + $0x2cc] sm:$0xf]
    %v335 = vld [vmem:[#allocation11 + $0x2d0] sm:$0xff]
    %v336 = vld [vmem:[#allocation11 + $0x2d8] sm:$0xff]
    %v337 = vld [vmem:[#allocation11 + $0x2e0] sm:$0xf]
    %v338 = vld [vmem:[#allocation11 + $0x2e4] sm:$0xff]
    %v339 = vld [vmem:[#allocation11 + $0x2ec] sm:$0xff]
    %v340 = vld [vmem:[#allocation11 + $0x2f4] sm:$0xf]
    %v341 = vld [vmem:[#allocation11 + $0x2f8] sm:$0xff]
    %v342 = vld [vmem:[#allocation11 + $0x300] sm:$0xff]
    %v343 = vld [vmem:[#allocation11 + $0x308] sm:$0xf]
    %v344 = vld [vmem:[#allocation11 + $0x30c] sm:$0xff]
    %v345 = vld [vmem:[#allocation11 + $0x314] sm:$0xff]
    %v346 = vld [vmem:[#allocation11 + $0x31c] sm:$0xf]
    %v347 = vld [vmem:[#allocation11 + $0x320] sm:$0xff]
    %v348 = vld [vmem:[#allocation11 + $0x328] sm:$0xff]
    %v349 = vld [vmem:[#allocation11 + $0x330] sm:$0xf]
    %v350 = vld [vmem:[#allocation11 + $0x334] sm:$0xff]
    %v351 = vld [vmem:[#allocation11 + $0x33c] sm:$0xff]
    %v352 = vld [vmem:[#allocation11 + $0x344] sm:$0xf]
    %v353 = vld [vmem:[#allocation11 + $0x348] sm:$0xff]
    %v354 = vld [vmem:[#allocation11 + $0x350] sm:$0xff]
    %v355 = vld [vmem:[#allocation11 + $0x358] sm:$0xf]
    %v356 = vld [vmem:[#allocation11 + $0x35c] sm:$0xff]
    %v357 = vld [vmem:[#allocation11 + $0x364] sm:$0xff]
    %v358 = vld [vmem:[#allocation11 + $0x36c] sm:$0xf]
    %v359 = vld [vmem:[#allocation11 + $0x370] sm:$0xff]
    %v360 = vld [vmem:[#allocation11 + $0x378] sm:$0xff]
    %v361 = vld [vmem:[#allocation11 + $0x380] sm:$0xf]
    %v362 = vld [vmem:[#allocation11 + $0x384] sm:$0xff]
    %v363 = vld [vmem:[#allocation11 + $0x38c] sm:$0xff]
    %v364 = vld [vmem:[#allocation11 + $0x394] sm:$0xf]
    %v365 = vld [vmem:[#allocation11 + $0x398] sm:$0xff]
    %v366 = vld [vmem:[#allocation11 + $0x3a0] sm:$0xff]
    %v367 = vld [vmem:[#allocation11 + $0x3a8] sm:$0xf]
    %v368 = vld [vmem:[#allocation11 + $0x3ac] sm:$0xff]
    %v369 = vld [vmem:[#allocation11 + $0x3b4] sm:$0xff]
    %v370 = vld [vmem:[#allocation11 + $0x3bc] sm:$0xf]
    %v371 = vld [vmem:[%s5] sm:$0x1f]
    %v373 = vperm.slane %v371, 0
    %v374 = vperm.slane %v371, 1
    %v375 = vperm.slane %v371, 2
    %v376 = vperm.slane %v371, 3
    %v377 = vperm.slane %v371, 4
    %v527 = vunpack.c.l.b16 %v227
    %v528 = vunpack.c.h.b16 %v227
    %v529 = vunpack.c.l.b16 %v228
    %v530 = vunpack.c.h.b16 %v228
    %v531 = vunpack.c.l.b16 %v229
    %v532 = vunpack.c.l.b16 %v230
    %v533 = vunpack.c.h.b16 %v230
    %v534 = vunpack.c.l.b16 %v231
    %v535 = vunpack.c.h.b16 %v231
    %v536 = vunpack.c.l.b16 %v232
    %v537 = vunpack.c.l.b16 %v233
    %v538 = vunpack.c.h.b16 %v233
    %v539 = vunpack.c.l.b16 %v234
    %v540 = vunpack.c.h.b16 %v234
    %v541 = vunpack.c.l.b16 %v235
    %v542 = vunpack.c.l.b16 %v236
    %v543 = vunpack.c.h.b16 %v236
    %v544 = vunpack.c.l.b16 %v237
    %v545 = vunpack.c.h.b16 %v237
    %v546 = vunpack.c.l.b16 %v238
    %v547 = vunpack.c.l.b16 %v239
    %v548 = vunpack.c.h.b16 %v239
    %v549 = vunpack.c.l.b16 %v240
    %v550 = vunpack.c.h.b16 %v240
    %v551 = vunpack.c.l.b16 %v241
    %v552 = vunpack.c.l.b16 %v242
    %v553 = vunpack.c.h.b16 %v242
    %v554 = vunpack.c.l.b16 %v243
    %v555 = vunpack.c.h.b16 %v243
    %v556 = vunpack.c.l.b16 %v244
    %v557 = vunpack.c.l.b16 %v245
    %v558 = vunpack.c.h.b16 %v245
    %v559 = vunpack.c.l.b16 %v246
    %v560 = vunpack.c.h.b16 %v246
    %v561 = vunpack.c.l.b16 %v247
    %v562 = vunpack.c.l.b16 %v248
    %v563 = vunpack.c.h.b16 %v248
    %v564 = vunpack.c.l.b16 %v249
    %v565 = vunpack.c.h.b16 %v249
    %v566 = vunpack.c.l.b16 %v250
    %v567 = vunpack.c.l.b16 %v251
    %v568 = vunpack.c.h.b16 %v251
    %v569 = vunpack.c.l.b16 %v252
    %v570 = vunpack.c.h.b16 %v252
    %v571 = vunpack.c.l.b16 %v253
    %v572 = vunpack.c.l.b16 %v254
    %v573 = vunpack.c.h.b16 %v254
    %v574 = vunpack.c.l.b16 %v255
    %v575 = vunpack.c.h.b16 %v255
    %v576 = vunpack.c.l.b16 %v256
    %v577 = vunpack.c.l.b16 %v257
    %v578 = vunpack.c.h.b16 %v257
    %v579 = vunpack.c.l.b16 %v258
    %v580 = vunpack.c.h.b16 %v258
    %v581 = vunpack.c.l.b16 %v259
    %v582 = vunpack.c.l.b16 %v260
    %v583 = vunpack.c.h.b16 %v260
    %v584 = vunpack.c.l.b16 %v261
    %v585 = vunpack.c.h.b16 %v261
    %v586 = vunpack.c.l.b16 %v262
    %v587 = vunpack.c.l.b16 %v263
    %v588 = vunpack.c.h.b16 %v263
    %v589 = vunpack.c.l.b16 %v264
    %v590 = vunpack.c.h.b16 %v264
    %v591 = vunpack.c.l.b16 %v265
    %v592 = vunpack.c.l.b16 %v266
    %v593 = vunpack.c.h.b16 %v266
    %v594 = vunpack.c.l.b16 %v267
    %v595 = vunpack.c.h.b16 %v267
    %v596 = vunpack.c.l.b16 %v268
    %v597 = vunpack.c.l.b16 %v269
    %v598 = vunpack.c.h.b16 %v269
    %v599 = vunpack.c.l.b16 %v270
    %v600 = vunpack.c.h.b16 %v270
    %v601 = vunpack.c.l.b16 %v271
    %v602 = vunpack.c.l.b16 %v272
    %v603 = vunpack.c.h.b16 %v272
    %v604 = vunpack.c.l.b16 %v273
    %v605 = vunpack.c.h.b16 %v273
    %v606 = vunpack.c.l.b16 %v274
    %v607 = vunpack.c.l.b16 %v275
    %v608 = vunpack.c.h.b16 %v275
    %v609 = vunpack.c.l.b16 %v276
    %v610 = vunpack.c.h.b16 %v276
    %v611 = vunpack.c.l.b16 %v277
    %v612 = vunpack.c.l.b16 %v278
    %v613 = vunpack.c.h.b16 %v278
    %v614 = vunpack.c.l.b16 %v279
    %v615 = vunpack.c.h.b16 %v279
    %v616 = vunpack.c.l.b16 %v280
    %v617 = vunpack.c.l.b16 %v281
    %v618 = vunpack.c.h.b16 %v281
    %v619 = vunpack.c.l.b16 %v282
    %v620 = vunpack.c.h.b16 %v282
    %v621 = vunpack.c.l.b16 %v283
    %v622 = vunpack.c.l.b16 %v284
    %v623 = vunpack.c.h.b16 %v284
    %v624 = vunpack.c.l.b16 %v285
    %v625 = vunpack.c.h.b16 %v285
    %v626 = vunpack.c.l.b16 %v286
    %v627 = vunpack.c.l.b16 %v287
    %v628 = vunpack.c.h.b16 %v287
    %v629 = vunpack.c.l.b16 %v288
    %v630 = vunpack.c.h.b16 %v288
    %v631 = vunpack.c.l.b16 %v289
    %v632 = vunpack.c.l.b16 %v290
    %v633 = vunpack.c.h.b16 %v290
    %v634 = vunpack.c.l.b16 %v291
    %v635 = vunpack.c.h.b16 %v291
    %v636 = vunpack.c.l.b16 %v292
    %v637 = vunpack.c.l.b16 %v293
    %v638 = vunpack.c.h.b16 %v293
    %v639 = vunpack.c.l.b16 %v294
    %v640 = vunpack.c.h.b16 %v294
    %v641 = vunpack.c.l.b16 %v295
    %v642 = vunpack.c.l.b16 %v296
    %v643 = vunpack.c.h.b16 %v296
    %v644 = vunpack.c.l.b16 %v297
    %v645 = vunpack.c.h.b16 %v297
    %v646 = vunpack.c.l.b16 %v298
    %v647 = vunpack.c.l.b16 %v299
    %v648 = vunpack.c.h.b16 %v299
    %v649 = vunpack.c.l.b16 %v300
    %v650 = vunpack.c.h.b16 %v300
    %v651 = vunpack.c.l.b16 %v301
    %v652 = vunpack.c.l.b16 %v302
    %v653 = vunpack.c.h.b16 %v302
    %v654 = vunpack.c.l.b16 %v303
    %v655 = vunpack.c.h.b16 %v303
    %v656 = vunpack.c.l.b16 %v304
    %v657 = vunpack.c.l.b16 %v305
    %v658 = vunpack.c.h.b16 %v305
    %v659 = vunpack.c.l.b16 %v306
    %v660 = vunpack.c.h.b16 %v306
    %v661 = vunpack.c.l.b16 %v307
    %v662 = vunpack.c.l.b16 %v308
    %v663 = vunpack.c.h.b16 %v308
    %v664 = vunpack.c.l.b16 %v309
    %v665 = vunpack.c.h.b16 %v309
    %v666 = vunpack.c.l.b16 %v310
    %v667 = vunpack.c.l.b16 %v311
    %v668 = vunpack.c.h.b16 %v311
    %v669 = vunpack.c.l.b16 %v312
    %v670 = vunpack.c.h.b16 %v312
    %v671 = vunpack.c.l.b16 %v313
    %v672 = vunpack.c.l.b16 %v314
    %v673 = vunpack.c.h.b16 %v314
    %v674 = vunpack.c.l.b16 %v315
    %v675 = vunpack.c.h.b16 %v315
    %v676 = vunpack.c.l.b16 %v316
    %v677 = vunpack.c.l.b16 %v317
    %v678 = vunpack.c.h.b16 %v317
    %v679 = vunpack.c.l.b16 %v318
    %v680 = vunpack.c.h.b16 %v318
    %v681 = vunpack.c.l.b16 %v319
    %v682 = vunpack.c.l.b16 %v320
    %v683 = vunpack.c.h.b16 %v320
    %v684 = vunpack.c.l.b16 %v321
    %v685 = vunpack.c.h.b16 %v321
    %v686 = vunpack.c.l.b16 %v322
    %v687 = vunpack.c.l.b16 %v323
    %v688 = vunpack.c.h.b16 %v323
    %v689 = vunpack.c.l.b16 %v324
    %v690 = vunpack.c.h.b16 %v324
    %v691 = vunpack.c.l.b16 %v325
    %v692 = vunpack.c.l.b16 %v326
    %v693 = vunpack.c.h.b16 %v326
    %v694 = vunpack.c.l.b16 %v327
    %v695 = vunpack.c.h.b16 %v327
    %v696 = vunpack.c.l.b16 %v328
    %v697 = vunpack.c.l.b16 %v329
    %v698 = vunpack.c.h.b16 %v329
    %v699 = vunpack.c.l.b16 %v330
    %v700 = vunpack.c.h.b16 %v330
    %v701 = vunpack.c.l.b16 %v331
    %v702 = vunpack.c.l.b16 %v332
    %v703 = vunpack.c.h.b16 %v332
    %v704 = vunpack.c.l.b16 %v333
    %v705 = vunpack.c.h.b16 %v333
    %v706 = vunpack.c.l.b16 %v334
    %v707 = vunpack.c.l.b16 %v335
    %v708 = vunpack.c.h.b16 %v335
    %v709 = vunpack.c.l.b16 %v336
    %v710 = vunpack.c.h.b16 %v336
    %v711 = vunpack.c.l.b16 %v337
    %v712 = vunpack.c.l.b16 %v338
    %v713 = vunpack.c.h.b16 %v338
    %v714 = vunpack.c.l.b16 %v339
    %v715 = vunpack.c.h.b16 %v339
    %v716 = vunpack.c.l.b16 %v340
    %v717 = vunpack.c.l.b16 %v341
    %v718 = vunpack.c.h.b16 %v341
    %v719 = vunpack.c.l.b16 %v342
    %v720 = vunpack.c.h.b16 %v342
    %v721 = vunpack.c.l.b16 %v343
    %v722 = vunpack.c.l.b16 %v344
    %v723 = vunpack.c.h.b16 %v344
    %v724 = vunpack.c.l.b16 %v345
    %v725 = vunpack.c.h.b16 %v345
    %v726 = vunpack.c.l.b16 %v346
    %v727 = vunpack.c.l.b16 %v347
    %v728 = vunpack.c.h.b16 %v347
    %v729 = vunpack.c.l.b16 %v348
    %v730 = vunpack.c.h.b16 %v348
    %v731 = vunpack.c.l.b16 %v349
    %v732 = vunpack.c.l.b16 %v350
    %v733 = vunpack.c.h.b16 %v350
    %v734 = vunpack.c.l.b16 %v351
    %v735 = vunpack.c.h.b16 %v351
    %v736 = vunpack.c.l.b16 %v352
    %v737 = vunpack.c.l.b16 %v353
    %v738 = vunpack.c.h.b16 %v353
    %v739 = vunpack.c.l.b16 %v354
    %v740 = vunpack.c.h.b16 %v354
    %v741 = vunpack.c.l.b16 %v355
    %v742 = vunpack.c.l.b16 %v356
    %v743 = vunpack.c.h.b16 %v356
    %v744 = vunpack.c.l.b16 %v357
    %v745 = vunpack.c.h.b16 %v357
    %v746 = vunpack.c.l.b16 %v358
    %v747 = vunpack.c.l.b16 %v359
    %v748 = vunpack.c.h.b16 %v359
    %v749 = vunpack.c.l.b16 %v360
    %v750 = vunpack.c.h.b16 %v360
    %v751 = vunpack.c.l.b16 %v361
    %v752 = vunpack.c.l.b16 %v362
    %v753 = vunpack.c.h.b16 %v362
    %v754 = vunpack.c.l.b16 %v363
    %v755 = vunpack.c.h.b16 %v363
    %v756 = vunpack.c.l.b16 %v364
    %v757 = vunpack.c.l.b16 %v365
    %v758 = vunpack.c.h.b16 %v365
    %v759 = vunpack.c.l.b16 %v366
    %v760 = vunpack.c.h.b16 %v366
    %v761 = vunpack.c.l.b16 %v367
    %v762 = vunpack.c.l.b16 %v368
    %v763 = vunpack.c.h.b16 %v368
    %v764 = vunpack.c.l.b16 %v369
    %v765 = vunpack.c.h.b16 %v369
    %v766 = vunpack.c.l.b16 %v370
    %v767 = vpack.c.b16 %v532, %v527
    %v768 = vpack.c.b16 %v533, %v528
    %v769 = vpack.c.b16 %v534, %v529
    %v770 = vpack.c.b16 %v535, %v530
    %v771 = vpack.c.b16 %v536, %v531
    %v772 = vpack.c.b16 %v542, %v537
    %v773 = vpack.c.b16 %v543, %v538
    %v774 = vpack.c.b16 %v544, %v539
    %v775 = vpack.c.b16 %v545, %v540
    %v776 = vpack.c.b16 %v546, %v541
    %v777 = vpack.c.b16 %v552, %v547
    %v778 = vpack.c.b16 %v553, %v548
    %v779 = vpack.c.b16 %v554, %v549
    %v780 = vpack.c.b16 %v555, %v550
    %v781 = vpack.c.b16 %v556, %v551
    %v782 = vpack.c.b16 %v562, %v557
    %v783 = vpack.c.b16 %v563, %v558
    %v784 = vpack.c.b16 %v564, %v559
    %v785 = vpack.c.b16 %v565, %v560
    %v786 = vpack.c.b16 %v566, %v561
    %v787 = vpack.c.b16 %v572, %v567
    %v788 = vpack.c.b16 %v573, %v568
    %v789 = vpack.c.b16 %v574, %v569
    %v790 = vpack.c.b16 %v575, %v570
    %v791 = vpack.c.b16 %v576, %v571
    %v792 = vpack.c.b16 %v582, %v577
    %v793 = vpack.c.b16 %v583, %v578
    %v794 = vpack.c.b16 %v584, %v579
    %v795 = vpack.c.b16 %v585, %v580
    %v796 = vpack.c.b16 %v586, %v581
    %v797 = vpack.c.b16 %v592, %v587
    %v798 = vpack.c.b16 %v593, %v588
    %v799 = vpack.c.b16 %v594, %v589
    %v800 = vpack.c.b16 %v595, %v590
    %v801 = vpack.c.b16 %v596, %v591
    %v802 = vpack.c.b16 %v602, %v597
    %v803 = vpack.c.b16 %v603, %v598
    %v804 = vpack.c.b16 %v604, %v599
    %v805 = vpack.c.b16 %v605, %v600
    %v806 = vpack.c.b16 %v606, %v601
    %v807 = vpack.c.b16 %v612, %v607
    %v808 = vpack.c.b16 %v613, %v608
    %v809 = vpack.c.b16 %v614, %v609
    %v810 = vpack.c.b16 %v615, %v610
    %v811 = vpack.c.b16 %v616, %v611
    %v812 = vpack.c.b16 %v622, %v617
    %v813 = vpack.c.b16 %v623, %v618
    %v814 = vpack.c.b16 %v624, %v619
    %v815 = vpack.c.b16 %v625, %v620
    %v816 = vpack.c.b16 %v626, %v621
    %v817 = vpack.c.b16 %v632, %v627
    %v818 = vpack.c.b16 %v633, %v628
    %v819 = vpack.c.b16 %v634, %v629
    %v820 = vpack.c.b16 %v635, %v630
    %v821 = vpack.c.b16 %v636, %v631
    %v822 = vpack.c.b16 %v642, %v637
    %v823 = vpack.c.b16 %v643, %v638
    %v824 = vpack.c.b16 %v644, %v639
    %v825 = vpack.c.b16 %v645, %v640
    %v826 = vpack.c.b16 %v646, %v641
    %v827 = vpack.c.b16 %v652, %v647
    %v828 = vpack.c.b16 %v653, %v648
    %v829 = vpack.c.b16 %v654, %v649
    %v830 = vpack.c.b16 %v655, %v650
    %v831 = vpack.c.b16 %v656, %v651
    %v832 = vpack.c.b16 %v662, %v657
    %v833 = vpack.c.b16 %v663, %v658
    %v834 = vpack.c.b16 %v664, %v659
    %v835 = vpack.c.b16 %v665, %v660
    %v836 = vpack.c.b16 %v666, %v661
    %v837 = vpack.c.b16 %v672, %v667
    %v838 = vpack.c.b16 %v673, %v668
    %v839 = vpack.c.b16 %v674, %v669
    %v840 = vpack.c.b16 %v675, %v670
    %v841 = vpack.c.b16 %v676, %v671
    %v842 = vpack.c.b16 %v682, %v677
    %v843 = vpack.c.b16 %v683, %v678
    %v844 = vpack.c.b16 %v684, %v679
    %v845 = vpack.c.b16 %v685, %v680
    %v846 = vpack.c.b16 %v686, %v681
    %v847 = vpack.c.b16 %v692, %v687
    %v848 = vpack.c.b16 %v693, %v688
    %v849 = vpack.c.b16 %v694, %v689
    %v850 = vpack.c.b16 %v695, %v690
    %v851 = vpack.c.b16 %v696, %v691
    %v852 = vpack.c.b16 %v702, %v697
    %v853 = vpack.c.b16 %v703, %v698
    %v854 = vpack.c.b16 %v704, %v699
    %v855 = vpack.c.b16 %v705, %v700
    %v856 = vpack.c.b16 %v706, %v701
    %v857 = vpack.c.b16 %v712, %v707
    %v858 = vpack.c.b16 %v713, %v708
    %v859 = vpack.c.b16 %v714, %v709
    %v860 = vpack.c.b16 %v715, %v710
    %v861 = vpack.c.b16 %v716, %v711
    %v862 = vpack.c.b16 %v722, %v717
    %v863 = vpack.c.b16 %v723, %v718
    %v864 = vpack.c.b16 %v724, %v719
    %v865 = vpack.c.b16 %v725, %v720
    %v866 = vpack.c.b16 %v726, %v721
    %v867 = vpack.c.b16 %v732, %v727
    %v868 = vpack.c.b16 %v733, %v728
    %v869 = vpack.c.b16 %v734, %v729
    %v870 = vpack.c.b16 %v735, %v730
    %v871 = vpack.c.b16 %v736, %v731
    %v872 = vpack.c.b16 %v742, %v737
    %v873 = vpack.c.b16 %v743, %v738
    %v874 = vpack.c.b16 %v744, %v739
    %v875 = vpack.c.b16 %v745, %v740
    %v876 = vpack.c.b16 %v746, %v741
    %v877 = vpack.c.b16 %v752, %v747
    %v878 = vpack.c.b16 %v753, %v748
    %v879 = vpack.c.b16 %v754, %v749
    %v880 = vpack.c.b16 %v755, %v750
    %v881 = vpack.c.b16 %v756, %v751
    %v882 = vpack.c.b16 %v762, %v757
    %v883 = vpack.c.b16 %v763, %v758
    %v884 = vpack.c.b16 %v764, %v759
    %v885 = vpack.c.b16 %v765, %v760
    %v886 = vpack.c.b16 %v766, %v761
    %1007 = vmatpush.bf16.msra.mxu0 %v802
    %1008 = vmatpush.bf16.msra.mxu0 %v797
    %1009 = vmatpush.bf16.msra.mxu0 %v792
    %1010 = vmatpush.bf16.msra.mxu0 %v787
    %1011 = vmatpush.bf16.msra.mxu0 %v782
    %1012 = vmatpush.bf16.msra.mxu0 %v777
    %1013 = vmatpush.bf16.msra.mxu0 %v772
    %1014 = vmatpush.bf16.msra.mxu0 %v767
    %1015 = vmatmul.bf16.gmra.mxu0 %v224
    %v1016 = vpop.f32.mrf.mxu0
    %v1017 = vadd.f32 %v373, %v1016
    %v1018 = vpop.f32.mrf.mxu0
    %1019 = vdwg.mxu0
    %1020 = vmatpush.bf16.msra.mxu0 %v842
    %1021 = vmatpush.bf16.msra.mxu0 %v837
    %1022 = vmatpush.bf16.msra.mxu0 %v832
    %1023 = vmatpush.bf16.msra.mxu0 %v827
    %1024 = vmatpush.bf16.msra.mxu0 %v822
    %1025 = vmatpush.bf16.msra.mxu0 %v817
    %1026 = vmatpush.bf16.msra.mxu0 %v812
    %1027 = vmatpush.bf16.msra.mxu0 %v807
    %1028 = vmatmul.bf16.gmra.mxu0 %v225
    %v1029 = vpop.f32.mrf.mxu0
    %v1030 = vadd.f32 %v1017, %v1029
    %v1031 = vpop.f32.mrf.mxu0
    %1032 = vdwg.mxu0
    %1033 = vmatpush.bf16.msra.mxu0 %v882
    %1034 = vmatpush.bf16.msra.mxu0 %v877
    %1035 = vmatpush.bf16.msra.mxu0 %v872
    %1036 = vmatpush.bf16.msra.mxu0 %v867
    %1037 = vmatpush.bf16.msra.mxu0 %v862
    %1038 = vmatpush.bf16.msra.mxu0 %v857
    %1039 = vmatpush.bf16.msra.mxu0 %v852
    %1040 = vmatpush.bf16.msra.mxu0 %v847
    %1041 = vmatmul.bf16.gmra.mxu0 %v226
    %v1042 = vpop.f32.mrf.mxu0
    %v1043 = vadd.f32 %v1030, %v1042
    %v1044 = vpop.f32.mrf.mxu0
    %1045 = vdwg.mxu0
    %1046 = vmatpush.bf16.msra.mxu0 %v803
    %1047 = vmatpush.bf16.msra.mxu0 %v798
    %1048 = vmatpush.bf16.msra.mxu0 %v793
    %1049 = vmatpush.bf16.msra.mxu0 %v788
    %1050 = vmatpush.bf16.msra.mxu0 %v783
    %1051 = vmatpush.bf16.msra.mxu0 %v778
    %1052 = vmatpush.bf16.msra.mxu0 %v773
    %1053 = vmatpush.bf16.msra.mxu0 %v768
    %1054 = vmatmul.bf16.gmra.mxu0 %v224
    %v1055 = vpop.f32.mrf.mxu0
    %v1056 = vadd.f32 %v374, %v1055
    %v1057 = vpop.f32.mrf.mxu0
    %1058 = vdwg.mxu0
    %1059 = vmatpush.bf16.msra.mxu0 %v843
    %1060 = vmatpush.bf16.msra.mxu0 %v838
    %1061 = vmatpush.bf16.msra.mxu0 %v833
    %1062 = vmatpush.bf16.msra.mxu0 %v828
    %1063 = vmatpush.bf16.msra.mxu0 %v823
    %1064 = vmatpush.bf16.msra.mxu0 %v818
    %1065 = vmatpush.bf16.msra.mxu0 %v813
    %1066 = vmatpush.bf16.msra.mxu0 %v808
    %1067 = vmatmul.bf16.gmra.mxu0 %v225
    %v1068 = vpop.f32.mrf.mxu0
    %v1069 = vadd.f32 %v1056, %v1068
    %v1070 = vpop.f32.mrf.mxu0
    %1071 = vdwg.mxu0
    %1072 = vmatpush.bf16.msra.mxu0 %v883
    %1073 = vmatpush.bf16.msra.mxu0 %v878
    %1074 = vmatpush.bf16.msra.mxu0 %v873
    %1075 = vmatpush.bf16.msra.mxu0 %v868
    %1076 = vmatpush.bf16.msra.mxu0 %v863
    %1077 = vmatpush.bf16.msra.mxu0 %v858
    %1078 = vmatpush.bf16.msra.mxu0 %v853
    %1079 = vmatpush.bf16.msra.mxu0 %v848
    %1080 = vmatmul.bf16.gmra.mxu0 %v226
    %v1081 = vpop.f32.mrf.mxu0
    %v1082 = vadd.f32 %v1069, %v1081
    %v1083 = vpop.f32.mrf.mxu0
    %1084 = vdwg.mxu0
    %1085 = vmatpush.bf16.msra.mxu0 %v804
    %1086 = vmatpush.bf16.msra.mxu0 %v799
    %1087 = vmatpush.bf16.msra.mxu0 %v794
    %1088 = vmatpush.bf16.msra.mxu0 %v789
    %1089 = vmatpush.bf16.msra.mxu0 %v784
    %1090 = vmatpush.bf16.msra.mxu0 %v779
    %1091 = vmatpush.bf16.msra.mxu0 %v774
    %1092 = vmatpush.bf16.msra.mxu0 %v769
    %1093 = vmatmul.bf16.gmra.mxu0 %v224
    %v1094 = vpop.f32.mrf.mxu0
    %v1095 = vadd.f32 %v375, %v1094
    %v1096 = vpop.f32.mrf.mxu0
    %1097 = vdwg.mxu0
    %1098 = vmatpush.bf16.msra.mxu0 %v844
    %1099 = vmatpush.bf16.msra.mxu0 %v839
    %1100 = vmatpush.bf16.msra.mxu0 %v834
    %1101 = vmatpush.bf16.msra.mxu0 %v829
    %1102 = vmatpush.bf16.msra.mxu0 %v824
    %1103 = vmatpush.bf16.msra.mxu0 %v819
    %1104 = vmatpush.bf16.msra.mxu0 %v814
    %1105 = vmatpush.bf16.msra.mxu0 %v809
    %1106 = vmatmul.bf16.gmra.mxu0 %v225
    %v1107 = vpop.f32.mrf.mxu0
    %v1108 = vadd.f32 %v1095, %v1107
    %v1109 = vpop.f32.mrf.mxu0
    %1110 = vdwg.mxu0
    %1111 = vmatpush.bf16.msra.mxu0 %v884
    %1112 = vmatpush.bf16.msra.mxu0 %v879
    %1113 = vmatpush.bf16.msra.mxu0 %v874
    %1114 = vmatpush.bf16.msra.mxu0 %v869
    %1115 = vmatpush.bf16.msra.mxu0 %v864
    %1116 = vmatpush.bf16.msra.mxu0 %v859
    %1117 = vmatpush.bf16.msra.mxu0 %v854
    %1118 = vmatpush.bf16.msra.mxu0 %v849
    %1119 = vmatmul.bf16.gmra.mxu0 %v226
    %v1120 = vpop.f32.mrf.mxu0
    %v1121 = vadd.f32 %v1108, %v1120
    %v1122 = vpop.f32.mrf.mxu0
    %1123 = vdwg.mxu0
    %1124 = vmatpush.bf16.msra.mxu0 %v805
    %1125 = vmatpush.bf16.msra.mxu0 %v800
    %1126 = vmatpush.bf16.msra.mxu0 %v795
    %1127 = vmatpush.bf16.msra.mxu0 %v790
    %1128 = vmatpush.bf16.msra.mxu0 %v785
    %1129 = vmatpush.bf16.msra.mxu0 %v780
    %1130 = vmatpush.bf16.msra.mxu0 %v775
    %1131 = vmatpush.bf16.msra.mxu0 %v770
    %1132 = vmatmul.bf16.gmra.mxu0 %v224
    %v1133 = vpop.f32.mrf.mxu0
    %v1134 = vadd.f32 %v376, %v1133
    %v1135 = vpop.f32.mrf.mxu0
    %1136 = vdwg.mxu0
    %1137 = vmatpush.bf16.msra.mxu0 %v845
    %1138 = vmatpush.bf16.msra.mxu0 %v840
    %1139 = vmatpush.bf16.msra.mxu0 %v835
    %1140 = vmatpush.bf16.msra.mxu0 %v830
    %1141 = vmatpush.bf16.msra.mxu0 %v825
    %1142 = vmatpush.bf16.msra.mxu0 %v820
    %1143 = vmatpush.bf16.msra.mxu0 %v815
    %1144 = vmatpush.bf16.msra.mxu0 %v810
    %1145 = vmatmul.bf16.gmra.mxu0 %v225
    %v1146 = vpop.f32.mrf.mxu0
    %v1147 = vadd.f32 %v1134, %v1146
    %v1148 = vpop.f32.mrf.mxu0
    %1149 = vdwg.mxu0
    %1150 = vmatpush.bf16.msra.mxu0 %v885
    %1151 = vmatpush.bf16.msra.mxu0 %v880
    %1152 = vmatpush.bf16.msra.mxu0 %v875
    %1153 = vmatpush.bf16.msra.mxu0 %v870
    %1154 = vmatpush.bf16.msra.mxu0 %v865
    %1155 = vmatpush.bf16.msra.mxu0 %v860
    %1156 = vmatpush.bf16.msra.mxu0 %v855
    %1157 = vmatpush.bf16.msra.mxu0 %v850
    %1158 = vmatmul.bf16.gmra.mxu0 %v226
    %v1159 = vpop.f32.mrf.mxu0
    %v1160 = vadd.f32 %v1147, %v1159
    %v1161 = vpop.f32.mrf.mxu0
    %1162 = vdwg.mxu0
    %1163 = vmatpush.bf16.msra.mxu0 %v806
    %1164 = vmatpush.bf16.msra.mxu0 %v801
    %1165 = vmatpush.bf16.msra.mxu0 %v796
    %1166 = vmatpush.bf16.msra.mxu0 %v791
    %1167 = vmatpush.bf16.msra.mxu0 %v786
    %1168 = vmatpush.bf16.msra.mxu0 %v781
    %1169 = vmatpush.bf16.msra.mxu0 %v776
    %1170 = vmatpush.bf16.msra.mxu0 %v771
    %1171 = vmatmul.bf16.gmra.mxu0 %v224
    %v1172 = vpop.f32.mrf.mxu0
    %v1173 = vadd.f32 %v377, %v1172
    %v1174 = vpop.f32.mrf.mxu0
    %1175 = vdwg.mxu0
    %1176 = vmatpush.bf16.msra.mxu0 %v846
    %1177 = vmatpush.bf16.msra.mxu0 %v841
    %1178 = vmatpush.bf16.msra.mxu0 %v836
    %1179 = vmatpush.bf16.msra.mxu0 %v831
    %1180 = vmatpush.bf16.msra.mxu0 %v826
    %1181 = vmatpush.bf16.msra.mxu0 %v821
    %1182 = vmatpush.bf16.msra.mxu0 %v816
    %1183 = vmatpush.bf16.msra.mxu0 %v811
    %1184 = vmatmul.bf16.gmra.mxu0 %v225
    %v1185 = vpop.f32.mrf.mxu0
    %v1186 = vadd.f32 %v1173, %v1185
    %v1187 = vpop.f32.mrf.mxu0
    %1188 = vdwg.mxu0
    %1189 = vmatpush.bf16.msra.mxu0 %v886
    %1190 = vmatpush.bf16.msra.mxu0 %v881
    %1191 = vmatpush.bf16.msra.mxu0 %v876
    %1192 = vmatpush.bf16.msra.mxu0 %v871
    %1193 = vmatpush.bf16.msra.mxu0 %v866
    %1194 = vmatpush.bf16.msra.mxu0 %v861
    %1195 = vmatpush.bf16.msra.mxu0 %v856
    %1196 = vmatpush.bf16.msra.mxu0 %v851
    %1197 = vmatmul.bf16.gmra.mxu0 %v226
    %v1198 = vpop.f32.mrf.mxu0
    %v1199 = vadd.f32 %v1186, %v1198
    %v1200 = vpop.f32.mrf.mxu0
    %1201 = vdwg.mxu0
    %v1202 = vmax.f32 %v1043, 0.0
    %v1203 = vmax.f32 %v1082, 0.0
    %v1204 = vmax.f32 %v1121, 0.0
    %v1205 = vmax.f32 %v1160, 0.0
    %v1206 = vmax.f32 %v1199, 0.0
    %v1207 = vld [vmem:[#allocation12] sm:$0x1f]
    %v1209 = vperm.slane %v1207, 0
    %v1210 = vperm.slane %v1207, 1
    %v1211 = vperm.slane %v1207, 2
    %v1212 = vperm.slane %v1207, 3
    %v1213 = vperm.slane %v1207, 4
    %v1219 = vmul.f32 %v1202, %v1209
    %v1220 = vmul.f32 %v1203, %v1210
    %v1221 = vmul.f32 %v1204, %v1211
    %v1222 = vmul.f32 %v1205, %v1212
    %v1223 = vmul.f32 %v1206, %v1213
    %v1224 = vsel %vm172, %v1219, 0.0
    %v1225 = vsel %vm172, %v1220, 0.0
    %v1226 = vadd.f32 %v1224, %v1225
    %v1227 = vsel %vm172, %v1221, 0.0
    %v1228 = vadd.f32 %v1226, %v1227
    %v1229 = vsel %vm172, %v1222, 0.0
    %v1230 = vadd.f32 %v1228, %v1229
    %v1231 = vsel %vm172, %v1223, 0.0
    %v1232 = vadd.f32 %v1230, %v1231
    %1233 = vadd.xlane.f32.xlu0 %v1232
    %v1234 = vpop.xlane.xlu0 %1233
    %v1235 = vld [vmem:[#allocation3] sm:$0x1]
    %v1237 = vperm.slane %v1235, 0
    %v1239 = vadd.f32 %v1234, %v1237
    %vm1240 = vcmask 1024
    %1241 = vst.msk [vmem:[%s8] sm:$0x3] %vm1240, %v1239
    // Predicated region
    $region58: #{tpu_custom_call.1} parent=1 // pred_check
      _
    $region59: #{tpu_custom_call.1} parent=1 // pred_check_branch
      %1243 = sbr.rel (0) target = $region61
    $region60: #{tpu_custom_call.1} parent=1 // pred_region
      _
    $region61: #{tpu_custom_call.1} parent=1 // pred_fallthru
      _
    // Predicated region
    $region62: #{tpu_custom_call.1} parent=1 // pred_check
      _
    $region63: #{tpu_custom_call.1} parent=1 // pred_check_branch
      %1245 = sbr.rel (0) target = $region65
    $region64: #{tpu_custom_call.1} parent=1 // pred_region
      _
    $region65: #{tpu_custom_call.1} parent=1 // pred_fallthru
      _
    %1246 = vsyncpa [#allocation5], 1
    %1247 = vsyncpa [#allocation7], 1
    %1248 = vsyncpa [#allocation10], 1
    %1249 = vsyncpa [#allocation13], 1

</llo_original>
